<compile_context>
chip_gen: v7x
topology: tpu7x:2x2x1
jax: 0.10.0
libtpu: 0.0.40
codegen_flags: <defaults>
</compile_context>

<pallas_src>
import math

import jax
import jax.numpy as jnp
from jax import lax
from jax.experimental import pallas as pl
from jax.experimental.pallas import tpu as pltpu

_LANE_CANDIDATES = (2048, 1024, 512, 256, 128)   # lane-dense widths (multiples of 128)
_TARGET_BLOCK_BYTES = 4 * 1024 * 1024            # 4 MiB/block: 2 bufs x (in+out) = 16 MiB VMEM
_MIN_COPY_BYTES = 2 * 1024 * 1024                # below this a kernel launch is pure overhead


def _copy_kernel(x_ref, o_ref):
    # Pure vld -> vst identity copy; stays at HBM roofline on all generations.
    o_ref[...] = x_ref[...]


def _sublane_multiple(dtype):
    # f32/u32 -> 8, bf16 -> 16, int8/fp8 -> 32 (sub-32-bit dtypes pack along sublanes).
    itemsize = jnp.dtype(dtype).itemsize
    return max(8, 32 // max(1, itemsize))


def _pick_layout(total, sub):
    """Pick (rows, lanes) for a lane-dense 2-D slab of `total` elements."""
    # Prefer a layout whose rows are a sublane multiple (fully dense vregs).
    for lanes in _LANE_CANDIDATES:
        if total % lanes == 0 and (total // lanes) % sub == 0:
            return total // lanes, lanes
    for lanes in _LANE_CANDIDATES:
        if total % lanes == 0:
            return total // lanes, lanes
    return None, None


def _pick_block_rows(rows, lanes, itemsize, sub):
    """Row-block sized ~_TARGET_BLOCK_BYTES, preferring an exact divisor of rows."""
    target = max(sub, (_TARGET_BLOCK_BYTES // (lanes * itemsize)) // sub * sub)
    if target >= rows:
        return rows
    # Largest sublane-multiple divisor of rows that fits the target -> no
    # ragged last tile, no masked vst on the final grid step.
    for cand in range(target, sub - 1, -sub):
        if rows % cand == 0:
            return cand
    return target  # ragged last tile; still correct (masked stores), perf-only hazard


def _pallas_copy_2d(x2d):
    rows, lanes = x2d.shape
    itemsize = jnp.dtype(x2d.dtype).itemsize
    sub = _sublane_multiple(x2d.dtype)
    block_rows = _pick_block_rows(rows, lanes, itemsize, sub)
    grid = (pl.cdiv(rows, block_rows),)

    return pl.pallas_call(
        _copy_kernel,
        out_shape=jax.ShapeDtypeStruct((rows, lanes), x2d.dtype),
        grid_spec=pltpu.PrefetchScalarGridSpec(
            num_scalar_prefetch=0,
            grid=grid,
            in_specs=[pl.BlockSpec((block_rows, lanes), lambda i: (i, 0))],
            out_specs=pl.BlockSpec((block_rows, lanes), lambda i: (i, 0)),
        ),
        compiler_params=pltpu.CompilerParams(
            # Independent row blocks; harmless on single-core chips.
            dimension_semantics=("parallel",),
            # Explicit scoped-VMEM budget: 4 MiB blocks double-buffered on both
            # input and output (16 MiB) would exactly hit v5e's 16 MiB default.
            vmem_limit_bytes=64 << 20,
        ),
        cost_estimate=pl.CostEstimate(
            flops=0,
            transcendentals=0,
            bytes_accessed=2 * rows * lanes * itemsize,
        ),
    )(x2d)


def _materialized_copy(flat, force_kernel=False):
    """Identity copy of a flat 1-D buffer via a lane-dense, tiled Pallas kernel.

    Returns the input untouched (metadata-only) when the copy would be
    overhead-dominated or would require padding traffic.
    """
    total = flat.shape[0]
    if total == 0:
        return flat

    itemsize = jnp.dtype(flat.dtype).itemsize
    total_bytes = total * itemsize
    if not force_kernel and total_bytes < _MIN_COPY_BYTES:
        # Launch/step overhead would dominate a pure copy of this size, and
        # .view() is metadata-only anyway.
        return flat

    # Packed dtypes: copy as uint32 words when byte-aligned so the sublane
    # quantum is 8 and more sizes qualify for the fully-dense layout.
    work = flat
    orig_dtype = flat.dtype
    packed = False
    if itemsize < 4 and total_bytes % 4 == 0:
        pack = 4 // itemsize
        work = lax.bitcast_convert_type(flat.reshape(total // pack, pack), jnp.uint32)
        packed = True

    wtotal = work.shape[0]
    sub = _sublane_multiple(work.dtype)
    rows, lanes = _pick_layout(wtotal, sub)
    if rows is None:
        # Not lane-divisible: a kernel copy would need padding (extra HBM
        # traffic) for a metadata-only op.  Return the buffer untouched.
        return flat

    out2d = _pallas_copy_2d(work.reshape(rows, lanes))
    out = out2d.reshape(wtotal)
    if packed:
        out = lax.bitcast_convert_type(out, orig_dtype).reshape(total)
    return out


def view_layer(x, *target_shape, materialize=False, force_kernel=False):
    """Pallas-backed equivalent of ViewLayer(*shape): x.view(x.size(0), *shape).

    Default (`materialize=False`) is the functionally-identical, zero-cost
    metadata-only reshape.  `materialize=True` routes large buffers through the
    tiled Pallas identity copy; `force_kernel=True` bypasses the size threshold
    (used here to exercise the kernel on small demo inputs).
    """
    b = x.shape[0]
    n = math.prod(x.shape[1:])

    # Resolve a single -1 (torch.view semantics).
    shape = list(target_shape)
    if shape.count(-1) > 1:
        raise ValueError("only one dimension can be inferred")
    if -1 in shape:
        known = math.prod(d for d in shape if d != -1)
        if known == 0 or n % known != 0:
            raise ValueError(f"cannot view {x.shape} as ({b}, {tuple(target_shape)})")
        shape[shape.index(-1)] = n // known
    if math.prod(shape) != n:
        raise ValueError(f"cannot view {x.shape} as ({b}, {tuple(shape)})")

    if not materialize:
        # .view() is a no-op on contiguous data: metadata-only reshape.
        return x.reshape(b, *shape)

    flat = x.reshape(b * n)
    out_flat = _materialized_copy(flat, force_kernel=force_kernel)
    return out_flat.reshape(b, *shape)


class ViewLayer:
    """Mirror of the PyTorch module: holds the target shape, applies it in __call__."""

    def __init__(self, *shape, materialize=False):
        self.shape = shape
        self.materialize = materialize

    def __call__(self, x):
        return view_layer(x, *self.shape, materialize=self.materialize)


if __name__ == "__main__":
    key = jax.random.PRNGKey(0)
    # Input consistent with a conv-style NCHW tensor: (B=2, C=4, H=16, W=16).
    x = jax.random.normal(key, (2, 4, 16, 16), dtype=jnp.float32)

    # Default path: ViewLayer(-1) -> (2, 1024), metadata-only (no kernel launch).
    y = jax.block_until_ready(ViewLayer(-1)(x))
    assert y.shape == (2, 4 * 16 * 16)
    assert jnp.array_equal(y, x.reshape(2, -1))

    # Default path: ViewLayer(64, 16) -> (2, 64, 16).
    y2 = jax.block_until_ready(ViewLayer(64, 16)(x))
    assert y2.shape == (2, 64, 16)
    assert jnp.array_equal(y2, x.reshape(2, 64, 16))

    # Exercise the Pallas copy kernel once (force past the size threshold so it
    # compiles and runs on this small demo input): f32 path.
    y3 = jax.block_until_ready(
        view_layer(x, 64, 16, materialize=True, force_kernel=True))
    assert y3.shape == (2, 64, 16)
    assert jnp.array_equal(y3, x.reshape(2, 64, 16))

    # Packed-dtype (bf16 -> uint32 bitcast) kernel path.
    xb = x.astype(jnp.bfloat16)
    y4 = jax.block_until_ready(
        view_layer(xb, -1, materialize=True, force_kernel=True))
    assert y4.shape == (2, 4 * 16 * 16)
    assert jnp.array_equal(y4, xb.reshape(2, -1))

    print("KERNEL_OK")
</pallas_src>

<mosaic_0001>
module attributes {stable_mosaic.version = 11 : i64} {
  func.func @_copy_kernel(%arg0: i32, %arg1: memref<8x256xf32, #tpu.memory_space<vmem>>, %arg2: memref<8x256xf32, #tpu.memory_space<vmem>>) attributes {dimension_semantics = [#tpu.dimension_semantics<parallel>], iteration_bounds = array<i64: 1>, scalar_prefetch = 0 : i64, scratch_operands = 0 : i64, tpu.core_type = #tpu.core_type<tc>, window_params = [{transform_indices = @transform_0, window_bounds = array<i64: 8, 256>}, {transform_indices = @transform_1, window_bounds = array<i64: 8, 256>}]} {
    %c0 = arith.constant 0 : index
    %c0_0 = arith.constant 0 : index
    %0 = vector.load %arg1[%c0, %c0_0] : memref<8x256xf32, #tpu.memory_space<vmem>>, vector<8x256xf32>
    %c0_1 = arith.constant 0 : index
    %c0_2 = arith.constant 0 : index
    %1 = vector.load %arg2[%c0_1, %c0_2] : memref<8x256xf32, #tpu.memory_space<vmem>>, vector<8x256xf32>
    tpu.vector_store %arg2[%c0_1, %c0_2], %0 {strides = array<i32>} : memref<8x256xf32, #tpu.memory_space<vmem>>, vector<8x256xf32>,
    return
  }
  func.func @transform_0(%arg0: i32) -> (i32, i32) {
    %c0_i32 = arith.constant 0 : i32
    %c0_i32_0 = arith.constant 0 : i32
    return %arg0, %c0_i32 : i32, i32
  }
  func.func @transform_1(%arg0: i32) -> (i32, i32) {
    %c0_i32 = arith.constant 0 : i32
    %c0_i32_0 = arith.constant 0 : i32
    return %arg0, %c0_i32 : i32, i32
  }
}

</mosaic_0001>

<llo_original>
// kernel: tpu_custom_call.1
$region0: #{tpu_custom_call.1}
  #allocation0 [shape = 'u32[]', space=smem, size = 0x4, offset = 0x4, fixed_abs, tag = 'smem constant byte address 0x4 - core index']
  #allocation1 [shape = 'u32[144,128]{1,0:T(1,128)}', space=vmem, size = 0x12000, scoped, tag = 'internal scratch']
  %s0 = inlined_call_operand.hbm [shape: f32[8,256], index: 0, kind: input, shape index: {}]
  %s1 = inlined_call_operand.hbm [shape: f32[8,256], index: 1, kind: output, shape index: {}]
  %s2 = sld [smem:[#allocation0]]
  $region18: #{tpu_custom_call.1} parent=0
    _
  %s4 = ssub.s32 1, %s2
  %s5 = scalar_select 0, %s4, %s2
  $region1: #{tpu_custom_call.1} parent=0
    #allocation2 [shape = 'u8[8192]{0}', space=vmem, size = 0x2000, scoped, tag = 'input window, operand 0, single buffered']
    #allocation3 [shape = 's32[1]{0}', space=sflag, size = 0x4, scoped, tag = 'scoped memory for tpu_custom_call.1']
    #allocation4 [shape = 's32[1]{0}', space=sflag, size = 0x4, scoped, tag = 'scoped memory for tpu_custom_call.1']
    #allocation5 [shape = 'u8[8192]{0}', space=vmem, size = 0x2000, scoped, tag = 'output window, operand 0, single buffered']
    %6 = vsyncpa [#allocation3], 0
    %7 = vsyncpa [#allocation4], 0
    // Predicated region
    $region2: #{tpu_custom_call.1} parent=1 // pred_check
      _
    $region3: #{tpu_custom_call.1} parent=1 // pred_check_branch
      %9 = sbr.rel (0) target = $region5
    $region4: #{tpu_custom_call.1} parent=1 // pred_region
      %s11 = ssub.s32 256, 256
      %12 = vsyncadd [#allocation3], %s11
      %s14 = sshll.u32 [#allocation2], 4
      %s15 = int_to_ptr.vmem [resolvable:$true] %s14
      %17 = dma.hbm_to_vmem [thread:$0]  %s0, 256, %s15, [#allocation3]
    $region5: #{tpu_custom_call.1} parent=1 // pred_fallthru
      _
    // Predicated region
    $region6: #{tpu_custom_call.1} parent=1 // pred_check
      _
    $region7: #{tpu_custom_call.1} parent=1 // pred_check_branch
      %19 = sbr.rel (0) target = $region9
    $region8: #{tpu_custom_call.1} parent=1 // pred_region
      %20 = dma.done [#allocation3], 256
    $region9: #{tpu_custom_call.1} parent=1 // pred_fallthru
      _
    %v21 = vld [vmem:[#allocation2] sm:$0xff]
    %v22 = vld [vmem:[#allocation2 + $0x8] sm:$0xff]
    %23 = vst [vmem:[#allocation5] sm:$0xff] %v21
    %24 = vst [vmem:[#allocation5 + $0x8] sm:$0xff] %v22
    // Predicated region
    $region10: #{tpu_custom_call.1} parent=1 // pred_check
      _
    $region11: #{tpu_custom_call.1} parent=1 // pred_check_branch
      %26 = sbr.rel (0) target = $region13
    $region12: #{tpu_custom_call.1} parent=1 // pred_region
      %s28 = ssub.s32 256, 256
      %29 = vsyncadd [#allocation4], %s28
      %s31 = sshll.u32 [#allocation5], 4
      %s32 = int_to_ptr.vmem [resolvable:$true] %s31
      %34 = dma.vmem_to_hbm [thread:$0]  %s32, 256, %s1, [#allocation4]
    $region13: #{tpu_custom_call.1} parent=1 // pred_fallthru
      _
    // Predicated region
    $region14: #{tpu_custom_call.1} parent=1 // pred_check
      _
    $region15: #{tpu_custom_call.1} parent=1 // pred_check_branch
      %36 = sbr.rel (0) target = $region17
    $region16: #{tpu_custom_call.1} parent=1 // pred_region
      %37 = dma.done [#allocation4], 256
    $region17: #{tpu_custom_call.1} parent=1 // pred_fallthru
      _
    %38 = vsyncpa [#allocation3], 1
    %39 = vsyncpa [#allocation4], 1

</llo_original>
